<compile_context>
chip_gen: v5e
topology: v5e:2x2
jax: 0.10.0
libtpu: 0.0.40
codegen_flags: <defaults>
</compile_context>

<pallas_src>
import functools
import math

import jax
import jax.numpy as jnp
from jax.experimental import pallas as pl
from jax.experimental.pallas import tpu as pltpu

_LANE = 128       # vreg lane width
_SUBLANE = 8      # vreg sublane count (f32)


def _round_up(x, m):
    return ((x + m - 1) // m) * m


def _reg_criterion_kernel(pred_ref, gt_ref, out_ref, acc_ref, *, denom):
    i = pl.program_id(0)

    @pl.when(i == 0)
    def _():
        acc_ref[...] = jnp.zeros_like(acc_ref)

    # Abs-diff in the native dtype, accumulate in f32.
    diff = jnp.abs(pred_ref[...] - gt_ref[...]).astype(jnp.float32)
    block_rows = diff.shape[0]
    # (block_rows, 128) -> (block_rows//8, 8, 128) is vreg-tile aligned; the
    # sum over axis 0 is just elementwise vreg adds on the VPU (no XLU).
    partial = diff.reshape(block_rows // _SUBLANE, _SUBLANE, _LANE).sum(axis=0)
    acc_ref[...] += partial

    @pl.when(i == pl.num_programs(0) - 1)
    def _():
        # Single cross-lane reduce of the (8,128) accumulator, then mean.
        out_ref[0, 0] = jnp.sum(acc_ref[...]) / jnp.float32(denom)


def reg_criterion(pred_point, gt_point, *, max_block_rows=8192):
    """Pallas implementation of REG_Criterion.forward. Returns a scalar f32."""
    assert pred_point.shape == gt_point.shape
    assert pred_point.dtype == gt_point.dtype

    # Number of elements of loss_map = prod(shape[:-1]) (last dim keepdims=1).
    denom = math.prod(pred_point.shape[:-1]) if pred_point.ndim > 1 else 1
    total = math.prod(pred_point.shape)

    # Lane-dense layout: flatten to (rows, 128), rows a multiple of the
    # sublane count and of the block row count.
    rows = _round_up(max(1, (total + _LANE - 1) // _LANE), _SUBLANE)
    block_rows = min(_round_up(max_block_rows, _SUBLANE), rows)
    rows = _round_up(rows, block_rows)
    padded_total = rows * _LANE
    num_blocks = rows // block_rows

    def _prep(x):
        x = x.reshape(-1)
        if padded_total > total:
            # Pad BOTH operands with zeros -> |0 - 0| = 0 adds nothing.
            x = jnp.pad(x, (0, padded_total - total))
        return x.reshape(rows, _LANE)

    p2 = _prep(pred_point)
    g2 = _prep(gt_point)

    kernel = functools.partial(_reg_criterion_kernel, denom=denom)

    out = pl.pallas_call(
        kernel,
        out_shape=jax.ShapeDtypeStruct((1, 1), jnp.float32),
        grid_spec=pltpu.PrefetchScalarGridSpec(
            num_scalar_prefetch=0,
            grid=(num_blocks,),
            in_specs=[
                pl.BlockSpec((block_rows, _LANE), lambda i: (i, 0)),
                pl.BlockSpec((block_rows, _LANE), lambda i: (i, 0)),
            ],
            out_specs=pl.BlockSpec(
                (1, 1), lambda i: (0, 0), memory_space=pltpu.SMEM
            ),
            scratch_shapes=[pltpu.VMEM((_SUBLANE, _LANE), jnp.float32)],
        ),
        compiler_params=pltpu.CompilerParams(
            dimension_semantics=("arbitrary",),  # accumulation across the grid
            vmem_limit_bytes=48 * 1024 * 1024,   # fits v5e/v6e/v7x budgets
        ),
    )(p2, g2)
    return out[0, 0]


def reg_criterion_ref(pred_point, gt_point):
    loss_map = jnp.sum(jnp.abs(pred_point - gt_point), axis=-1, keepdims=True)
    return jnp.mean(loss_map)


if __name__ == "__main__":
    key = jax.random.PRNGKey(0)
    k1, k2, k3, k4 = jax.random.split(key, 4)

    # batch=2, num_points=8, coord_dim=3 ("points")
    pred = jax.random.normal(k1, (2, 8, 3), dtype=jnp.float32)
    gt = jax.random.normal(k2, (2, 8, 3), dtype=jnp.float32)
    loss = jax.block_until_ready(reg_criterion(pred, gt))
    ref = jax.block_until_ready(reg_criterion_ref(pred, gt))
    assert jnp.allclose(loss, ref, rtol=1e-5, atol=1e-5), (loss, ref)

    # Exercise the multi-block accumulation path (small forced block size).
    pred2 = jax.random.normal(k3, (4, 512, 3), dtype=jnp.float32)
    gt2 = jax.random.normal(k4, (4, 512, 3), dtype=jnp.float32)
    loss2 = jax.block_until_ready(reg_criterion(pred2, gt2, max_block_rows=16))
    ref2 = jax.block_until_ready(reg_criterion_ref(pred2, gt2))
    assert jnp.allclose(loss2, ref2, rtol=1e-5, atol=1e-5), (loss2, ref2)

    print("KERNEL_OK")
</pallas_src>

<mosaic_0001>
module attributes {stable_mosaic.version = 11 : i64} {
  func.func @_reg_criterion_kernel(%arg0: i32, %arg1: memref<8x128xf32, #tpu.memory_space<vmem>>, %arg2: memref<8x128xf32, #tpu.memory_space<vmem>>, %arg3: memref<1x1xf32, #tpu.memory_space<smem>>, %arg4: memref<8x128xf32, #tpu.memory_space<vmem>>) attributes {dimension_semantics = [#tpu.dimension_semantics<arbitrary>], iteration_bounds = array<i64: 1>, scalar_prefetch = 0 : i64, scratch_operands = 1 : i64, tpu.core_type = #tpu.core_type<tc>, window_params = [{transform_indices = @transform_0, window_bounds = array<i64: 8, 128>}, {transform_indices = @transform_1, window_bounds = array<i64: 8, 128>}, {transform_indices = @transform_2, window_bounds = array<i64: 1, 1>}]} {
    %c0_i32 = arith.constant 0 : i32
    %0 = arith.cmpi eq, %arg0, %c0_i32 : i32
    %1 = arith.extui %0 : i1 to i32
    %c0_i32_0 = arith.constant 0 : i32
    %2 = arith.cmpi ne, %1, %c0_i32_0 : i32
    scf.if %2 {
      %cst_10 = arith.constant 0.000000e+00 : f32
      %15 = vector.broadcast %cst_10 : f32 to vector<8x128xf32>
      %c0_11 = arith.constant 0 : index
      %c0_12 = arith.constant 0 : index
      %16 = vector.load %arg4[%c0_11, %c0_12] : memref<8x128xf32, #tpu.memory_space<vmem>>, vector<8x128xf32>
      tpu.vector_store %arg4[%c0_11, %c0_12], %15 {strides = array<i32>} : memref<8x128xf32, #tpu.memory_space<vmem>>, vector<8x128xf32>,
    } else {
    }
    %c0 = arith.constant 0 : index
    %c0_1 = arith.constant 0 : index
    %3 = vector.load %arg1[%c0, %c0_1] : memref<8x128xf32, #tpu.memory_space<vmem>>, vector<8x128xf32>
    %c0_2 = arith.constant 0 : index
    %c0_3 = arith.constant 0 : index
    %4 = vector.load %arg2[%c0_2, %c0_3] : memref<8x128xf32, #tpu.memory_space<vmem>>, vector<8x128xf32>
    %5 = arith.subf %3, %4 : vector<8x128xf32>
    %6 = math.absf %5 : vector<8x128xf32>
    %7 = vector.shape_cast %6 : vector<8x128xf32> to vector<1x8x128xf32>
    %cst = arith.constant dense<0.000000e+00> : vector<8x128xf32>
    %8 = vector.multi_reduction <add>, %7, %cst [0] : vector<1x8x128xf32> to vector<8x128xf32>
    %c0_4 = arith.constant 0 : index
    %c0_5 = arith.constant 0 : index
    %9 = vector.load %arg4[%c0_4, %c0_5] : memref<8x128xf32, #tpu.memory_space<vmem>>, vector<8x128xf32>
    %10 = arith.addf %9, %8 : vector<8x128xf32>
    %c0_6 = arith.constant 0 : index
    %c0_7 = arith.constant 0 : index
    %11 = vector.load %arg4[%c0_6, %c0_7] : memref<8x128xf32, #tpu.memory_space<vmem>>, vector<8x128xf32>
    tpu.vector_store %arg4[%c0_6, %c0_7], %10 {strides = array<i32>} : memref<8x128xf32, #tpu.memory_space<vmem>>, vector<8x128xf32>,
    %c0_i32_8 = arith.constant 0 : i32
    %12 = arith.cmpi eq, %arg0, %c0_i32_8 : i32
    %13 = arith.extui %12 : i1 to i32
    %c0_i32_9 = arith.constant 0 : i32
    %14 = arith.cmpi ne, %13, %c0_i32_9 : i32
    scf.if %14 {
      %c0_10 = arith.constant 0 : index
      %c0_11 = arith.constant 0 : index
      %15 = vector.load %arg4[%c0_10, %c0_11] : memref<8x128xf32, #tpu.memory_space<vmem>>, vector<8x128xf32>
      %16 = vector.shape_cast %15 : vector<8x128xf32> to vector<1x8x128xf32>
      %cst_12 = arith.constant dense<0.000000e+00> : vector<1xf32>
      %17 = vector.multi_reduction <add>, %16, %cst_12 [1, 2] : vector<1x8x128xf32> to vector<1xf32>
      %18 = vector.shape_cast %17 : vector<1xf32> to vector<1x1x1xf32>
      %19 = vector.extract %18[0, 0, 0] : f32 from vector<1x1x1xf32>
      %cst_13 = arith.constant 1.600000e+01 : f32
      %20 = arith.divf %19, %cst_13 : f32
      %c0_14 = arith.constant 0 : index
      %c0_15 = arith.constant 0 : index
      %21 = memref.load %arg3[%c0_14, %c0_15] : memref<1x1xf32, #tpu.memory_space<smem>>
      memref.store %20, %arg3[%c0_14, %c0_15] : memref<1x1xf32, #tpu.memory_space<smem>>
    } else {
    }
    return
  }
  func.func @transform_0(%arg0: i32) -> (i32, i32) {
    %c0_i32 = arith.constant 0 : i32
    %c0_i32_0 = arith.constant 0 : i32
    return %arg0, %c0_i32 : i32, i32
  }
  func.func @transform_1(%arg0: i32) -> (i32, i32) {
    %c0_i32 = arith.constant 0 : i32
    %c0_i32_0 = arith.constant 0 : i32
    return %arg0, %c0_i32 : i32, i32
  }
  func.func @transform_2(%arg0: i32) -> (i32, i32) {
    %c0_i32 = arith.constant 0 : i32
    %c0_i32_0 = arith.constant 0 : i32
    %c0_i32_1 = arith.constant 0 : i32
    return %c0_i32, %c0_i32_0 : i32, i32
  }
}

</mosaic_0001>

<llo_original>
// kernel: tpu_custom_call.1
$region0: #{tpu_custom_call.1}
  #allocation0 [shape = 'u32[]', space=smem, size = 0x4, offset = 0x4, fixed_abs, tag = 'smem constant byte address 0x4 - core index']
  #allocation1 [shape = 'u32[72,128]{1,0:T(1,128)}', space=vmem, size = 0x9000, scoped, tag = 'internal scratch']
  #allocation2 [shape = 'f32[8,128]{1,0:T(8,128)}', space=vmem, size = 0x1000, scoped, tag = 'scratch operand']
  %s0 = inlined_call_operand.hbm [shape: f32[8,128], index: 0, kind: input, shape index: {}]
  %s1 = inlined_call_operand.hbm [shape: f32[8,128], index: 1, kind: input, shape index: {}]
  %s2 = inlined_call_operand.hbm [shape: f32[1,1], index: 2, kind: output, shape index: {}]
  %s3 = sld [smem:[#allocation0]]
  $region34: #{tpu_custom_call.1} parent=0
    _
  %s5 = ssub.s32 1, %s3
  %s6 = scalar_select 0, %s5, %s3
  $region1: #{tpu_custom_call.1} parent=0
    #allocation3 [shape = 'u8[4096]{0}', space=vmem, size = 0x1000, scoped, tag = 'input window, operand 0, single buffered']
    #allocation4 [shape = 's32[1]{0}', space=sflag, size = 0x4, scoped, tag = 'scoped memory for tpu_custom_call.1']
    #allocation5 [shape = 's32[1]{0}', space=sflag, size = 0x4, scoped, tag = 'scoped memory for tpu_custom_call.1']
    #allocation6 [shape = 'u8[4096]{0}', space=vmem, size = 0x1000, scoped, tag = 'input window, operand 1, single buffered']
    #allocation7 [shape = 's32[1]{0}', space=sflag, size = 0x4, scoped, tag = 'scoped memory for tpu_custom_call.1']
    #allocation8 [shape = 'u8[512]{0}', space=smem, size = 0x200, scoped, tag = 'output window, operand 0, single buffered']
    %7 = vsyncpa [#allocation4], 0
    %8 = vsyncpa [#allocation7], 0
    %9 = vsyncpa [#allocation5], 0
    // Predicated region
    $region2: #{tpu_custom_call.1} parent=1 // pred_check
      _
    $region3: #{tpu_custom_call.1} parent=1 // pred_check_branch
      %11 = sbr.rel (0) target = $region5
    $region4: #{tpu_custom_call.1} parent=1 // pred_region
      %13 = vsyncadd [#allocation4], 0
      %s15 = sshll.u32 %s0, 4
      %s16 = int_to_ptr.hbm [resolvable:$true] %s15
      %s17 = sshll.u32 [#allocation3], 4
      %s18 = int_to_ptr.vmem [resolvable:$true] %s17
      %20 = dma.hbm_to_vmem [thread:$0]  %s16, 128, %s18, [#allocation4]
    $region5: #{tpu_custom_call.1} parent=1 // pred_fallthru
      _
    // Predicated region
    $region6: #{tpu_custom_call.1} parent=1 // pred_check
      _
    $region7: #{tpu_custom_call.1} parent=1 // pred_check_branch
      %22 = sbr.rel (0) target = $region9
    $region8: #{tpu_custom_call.1} parent=1 // pred_region
      %24 = vsyncadd [#allocation7], 0
      %s26 = sshll.u32 %s1, 4
      %s27 = int_to_ptr.hbm [resolvable:$true] %s26
      %s28 = sshll.u32 [#allocation6], 4
      %s29 = int_to_ptr.vmem [resolvable:$true] %s28
      %31 = dma.hbm_to_vmem [thread:$0]  %s27, 128, %s29, [#allocation7]
    $region9: #{tpu_custom_call.1} parent=1 // pred_fallthru
      _
    // Predicated region
    $region10: #{tpu_custom_call.1} parent=1 // pred_check
      _
    $region11: #{tpu_custom_call.1} parent=1 // pred_check_branch
      %33 = sbr.rel (0) target = $region13
    $region12: #{tpu_custom_call.1} parent=1 // pred_region
      %35 = dma.done [#allocation4], 128
    $region13: #{tpu_custom_call.1} parent=1 // pred_fallthru
      _
    // Predicated region
    $region14: #{tpu_custom_call.1} parent=1 // pred_check
      _
    $region15: #{tpu_custom_call.1} parent=1 // pred_check_branch
      %37 = sbr.rel (0) target = $region17
    $region16: #{tpu_custom_call.1} parent=1 // pred_region
      %39 = dma.done [#allocation7], 128
    $region17: #{tpu_custom_call.1} parent=1 // pred_fallthru
      _
    %p40 = scmp.eq.s32.totalorder 0, 0
    // Predicated region
    $region18: #{tpu_custom_call.1} parent=1 // pred_check
      %p41 = pneg %p40
    $region19: #{tpu_custom_call.1} parent=1 // pred_check_branch
      %43 = sbr.rel (%p41) target = $region21
    $region20: #{tpu_custom_call.1} parent=1 // pred_region
      %44 = vst [vmem:[#allocation2] sm:$0xff] 0.0
    $region21: #{tpu_custom_call.1} parent=1 // pred_fallthru
      _
    %v45 = vld [vmem:[#allocation3] sm:$0xff]
    %v46 = vld [vmem:[#allocation6] sm:$0xff]
    %v47 = vsub.f32 %v45, %v46
    %v48 = vand.u32 2147483647, %v47
    %v49 = vadd.f32 %v48, 0.0
    %v50 = vld [vmem:[#allocation2] sm:$0xff]
    %v51 = vadd.f32 %v50, %v49
    %52 = vst [vmem:[#allocation2] sm:$0xff] %v51
    // Predicated region
    $region22: #{tpu_custom_call.1} parent=1 // pred_check
      %p53 = pneg %p40
    $region23: #{tpu_custom_call.1} parent=1 // pred_check_branch
      %55 = sbr.rel (%p53) target = $region25
    $region24: #{tpu_custom_call.1} parent=1 // pred_region
      %v56 = vld [vmem:[#allocation2] sm:$0xff]
      %57 = vadd.xlane.f32.xlu0 %v56
      %v58 = vpop.xlane.xlu0 %57
      %v59 = vrot.slane %v58, 4
      %v60 = vadd.f32 %v58, %v59
      %v61 = vrot.slane %v60, 2
      %v62 = vadd.f32 %v60, %v61
      %v63 = vrot.slane %v62, 1
      %v64 = vadd.f32 %v62, %v63
      %s65 = vtos %v64
      %v66 = vrcp.pop 16.0
      %v67 = vmul.f32 16.0, %v66
      %v68 = vsub.f32 1.0, %v67
      %v69 = vmul.f32 %v66, %v68
      %v70 = vadd.f32 %v66, %v69
      %vm71 = vweird.f32 %v66
      %v72 = vsel %vm71, %v66, %v70
      %s73 = vtos %v72
      %s74 = smul.f32 %s65, %s73
      %s75 = scalar_lea.smem [#allocation8], 0
      %76 = sst [smem:[%s75]] %s74
    $region25: #{tpu_custom_call.1} parent=1 // pred_fallthru
      _
    // Predicated region
    $region26: #{tpu_custom_call.1} parent=1 // pred_check
      _
    $region27: #{tpu_custom_call.1} parent=1 // pred_check_branch
      %78 = sbr.rel (0) target = $region29
    $region28: #{tpu_custom_call.1} parent=1 // pred_region
      %80 = vsyncadd [#allocation5], 0
      %s82 = sshll.u32 %s2, 4
      %s83 = int_to_ptr.hbm [resolvable:$true] %s82
      %85 = dma.smem_to_hbm [#allocation8], 16, %s83, [#allocation5]
    $region29: #{tpu_custom_call.1} parent=1 // pred_fallthru
      _
    // Predicated region
    $region30: #{tpu_custom_call.1} parent=1 // pred_check
      _
    $region31: #{tpu_custom_call.1} parent=1 // pred_check_branch
      %87 = sbr.rel (0) target = $region33
    $region32: #{tpu_custom_call.1} parent=1 // pred_region
      %89 = dma.done [#allocation5], 16
    $region33: #{tpu_custom_call.1} parent=1 // pred_fallthru
      _
    %90 = sfence
    %91 = vsyncpa [#allocation4], 1
    %92 = vsyncpa [#allocation7], 1
    %93 = vsyncpa [#allocation5], 1

</llo_original>
